<compile_context>
chip_gen: v5e
topology: v5e:2x2
jax: 0.10.0
libtpu: 0.0.40
codegen_flags: <defaults>
</compile_context>

<pallas_src>
from functools import partial

import jax
import jax.numpy as jnp
from jax import lax
from jax.experimental import pallas as pl
from jax.experimental.pallas import tpu as pltpu


def _conv_bottleneck_kernel(dec_ref, enc_ref, w_ref, b_ref, o_ref, *, width):
    # dec_ref: (1, C1, H*W)        one batch element, H*W flattened into the lane dim
    # enc_ref: (1, C2, H*W)
    # w_ref  : (3, Cout, 3*Cin)    indexed [kh, co, kw*Cin + ci], ci ordered [dec..., enc...]
    # b_ref  : (Cout, 1)
    # o_ref  : (1, Cout, H*W)
    hw = o_ref.shape[2]
    cout = o_ref.shape[1]

    lane = lax.broadcasted_iota(jnp.int32, (1, hw), 1)
    w_pos = lane % width                       # column index of every lane

    def shift(x, d):
        # y[:, i] = x[:, i + d], zero-filled outside [0, hw).  d is a static Python int.
        if d == 0:
            return x
        rows = x.shape[0]
        z = jnp.zeros((rows, abs(d)), x.dtype)
        if d > 0:
            return jnp.concatenate([x[:, d:], z], axis=1)
        return jnp.concatenate([z, x[:, :d]], axis=1)

    dec = dec_ref[0]                           # (C1, H*W)
    enc = enc_ref[0]                           # (C2, H*W)

    # Width taps: tap kw reads column (w + kw - 1).  A lane shift by dw = kw - 1 plus a
    # column-validity mask (the flat shift alone would wrap across row boundaries).
    pieces = []
    for kw in range(3):
        dw = kw - 1
        if dw == 0:
            pieces.append(dec)
            pieces.append(enc)
        else:
            valid = ((w_pos + dw >= 0) & (w_pos + dw < width)).astype(dec.dtype)
            pieces.append(shift(dec, dw) * valid)
            pieces.append(shift(enc, dw) * valid)
    # Fused channel-concat + kw im2col, all in VMEM: rows ordered kw*Cin + ci.
    xw = jnp.concatenate(pieces, axis=0)       # (3*Cin, H*W)

    acc = jnp.zeros((cout, hw), jnp.float32)
    # Height taps: shifting by dh*width lanes moves whole rows; the rows that fall off the
    # top/bottom land exactly on the zero-filled lanes, so no extra mask is needed.
    for kh in range(3):
        dh = kh - 1
        rhs = shift(xw, dh * width)            # (3*Cin, H*W)
        acc = acc + jnp.dot(w_ref[kh], rhs, preferred_element_type=jnp.float32)

    acc = acc + b_ref[...]                     # (Cout, 1) broadcasts over lanes
    o_ref[0] = jnp.maximum(acc, 0.0).astype(o_ref.dtype)


def conv_bottleneck(dec, enc, w, b):
    """Forward pass of ConvBottleneck.

    dec: (N, C1, H, W) float32
    enc: (N, C2, H, W) float32
    w  : (Cout, C1+C2, 3, 3) conv weight (PyTorch OIHW layout)
    b  : (Cout,) conv bias
    returns (N, Cout, H, W) float32
    """
    N, C1, H, W = dec.shape
    n2, C2, h2, w2 = enc.shape
    assert (N, H, W) == (n2, h2, w2)
    Cout, Cin, kh, kw = w.shape
    assert Cin == C1 + C2 and kh == 3 and kw == 3
    HW = H * W

    # Free metadata reshapes only -- no transpose / pad / concat through HBM.
    dec2 = dec.reshape(N, C1, HW)
    enc2 = enc.reshape(N, C2, HW)
    # (Cout, Cin, 3, 3) -> (kh, Cout, kw*Cin + ci)   (tiny, one-time)
    w_kern = jnp.transpose(w, (2, 0, 3, 1)).reshape(3, Cout, 3 * Cin)
    b2 = b.reshape(Cout, 1)

    out = pl.pallas_call(
        partial(_conv_bottleneck_kernel, width=W),
        out_shape=jax.ShapeDtypeStruct((N, Cout, HW), dec.dtype),
        grid_spec=pltpu.PrefetchScalarGridSpec(
            num_scalar_prefetch=0,
            grid=(N,),
            in_specs=[
                pl.BlockSpec((1, C1, HW), lambda n: (n, 0, 0)),
                pl.BlockSpec((1, C2, HW), lambda n: (n, 0, 0)),
                pl.BlockSpec((3, Cout, 3 * Cin), lambda n: (0, 0, 0)),
                pl.BlockSpec((Cout, 1), lambda n: (0, 0)),
            ],
            out_specs=pl.BlockSpec((1, Cout, HW), lambda n: (n, 0, 0)),
        ),
        compiler_params=pltpu.CompilerParams(
            dimension_semantics=("parallel",)),
    )(dec2, enc2, w_kern, b2)

    return out.reshape(N, Cout, H, W)


def _reference(dec, enc, w, b):
    # pure-JAX reference: cat along channels + conv 3x3 pad 1 + ReLU (NCHW)
    x = jnp.concatenate([dec, enc], axis=1)
    y = lax.conv_general_dilated(
        x, w, window_strides=(1, 1), padding=((1, 1), (1, 1)),
        dimension_numbers=("NCHW", "OIHW", "NCHW"))
    return jnp.maximum(y + b.reshape(1, -1, 1, 1), 0.0)


if __name__ == "__main__":
    # ConvBottleneck(in_channels=8, out_channels=8); dec and enc contribute 4 channels each.
    dec_ch, enc_ch, out_ch = 4, 4, 8
    N, H, W = 2, 16, 16

    key = jax.random.PRNGKey(0)
    kd, ke, kw_, kb = jax.random.split(key, 4)

    dec = jax.random.normal(kd, (N, dec_ch, H, W), dtype=jnp.float32)
    enc = jax.random.normal(ke, (N, enc_ch, H, W), dtype=jnp.float32)

    in_ch = dec_ch + enc_ch
    fan_in = in_ch * 3 * 3
    bound = 1.0 / (fan_in ** 0.5)
    w = jax.random.uniform(kw_, (out_ch, in_ch, 3, 3),
                           minval=-bound, maxval=bound, dtype=jnp.float32)
    b = jax.random.uniform(kb, (out_ch,),
                           minval=-bound, maxval=bound, dtype=jnp.float32)

    out = jax.block_until_ready(conv_bottleneck(dec, enc, w, b))
    ref = jax.block_until_ready(_reference(dec, enc, w, b))

    assert out.shape == (N, out_ch, H, W), out.shape
    max_err = float(jnp.max(jnp.abs(out - ref)))
    assert jnp.allclose(out, ref, atol=1e-3, rtol=1e-3), max_err

    print("KERNEL_OK")
</pallas_src>

<mosaic_0001>
module attributes {stable_mosaic.version = 11 : i64} {
  func.func @_conv_bottleneck_kernel(%arg0: i32, %arg1: memref<1x4x256xf32, #tpu.memory_space<vmem>>, %arg2: memref<1x4x256xf32, #tpu.memory_space<vmem>>, %arg3: memref<3x8x24xf32, #tpu.memory_space<vmem>>, %arg4: memref<8x1xf32, #tpu.memory_space<vmem>>, %arg5: memref<1x8x256xf32, #tpu.memory_space<vmem>>) attributes {dimension_semantics = [#tpu.dimension_semantics<parallel>], iteration_bounds = array<i64: 2>, scalar_prefetch = 0 : i64, scratch_operands = 0 : i64, tpu.core_type = #tpu.core_type<tc>, window_params = [{transform_indices = @transform_0, window_bounds = array<i64: 1, 4, 256>}, {transform_indices = @transform_1, window_bounds = array<i64: 1, 4, 256>}, {pipeline_mode = #tpu.pipeline_mode<synchronous>, transform_indices = @transform_2, window_bounds = array<i64: 3, 8, 24>}, {pipeline_mode = #tpu.pipeline_mode<synchronous>, transform_indices = @transform_3, window_bounds = array<i64: 8, 1>}, {transform_indices = @transform_4, window_bounds = array<i64: 1, 8, 256>}]} {
    %0 = tpu.iota {dimensions = array<i32: 1>} : vector<1x256xi32>
    %c16_i32 = arith.constant 16 : i32
    %c0_i32 = arith.constant 0 : i32
    %1 = arith.cmpi eq, %c16_i32, %c0_i32 : i32
    %c1_i32 = arith.constant 1 : i32
    %2 = arith.select %1, %c1_i32, %c16_i32 : i32
    %3 = vector.broadcast %2 : i32 to vector<1x256xi32>
    %4 = arith.remsi %0, %3 : vector<1x256xi32>
    %c0_i32_0 = arith.constant 0 : i32
    %5 = vector.broadcast %c0_i32_0 : i32 to vector<1x256xi32>
    %6 = arith.cmpi ne, %4, %5 : vector<1x256xi32>
    %c0_i32_1 = arith.constant 0 : i32
    %7 = vector.broadcast %c0_i32_1 : i32 to vector<1x256xi32>
    %8 = arith.cmpi slt, %4, %7 : vector<1x256xi32>
    %c0_i32_2 = arith.constant 0 : i32
    %9 = arith.cmpi slt, %2, %c0_i32_2 : i32
    %10 = vector.broadcast %9 : i1 to vector<1x256xi1>
    %11 = vector.broadcast %10 : vector<1x256xi1> to vector<1x256xi1>
    %12 = arith.xori %8, %11 : vector<1x256xi1>
    %13 = arith.andi %12, %6 : vector<1x256xi1>
    %14 = vector.broadcast %2 : i32 to vector<1x256xi32>
    %15 = arith.addi %4, %14 : vector<1x256xi32>
    %16 = arith.select %13, %15, %4 : vector<1x256xi1>, vector<1x256xi32>
    %c0 = arith.constant 0 : index
    %c0_3 = arith.constant 0 : index
    %c0_4 = arith.constant 0 : index
    %17 = vector.load %arg1[%c0, %c0_3, %c0_4] : memref<1x4x256xf32, #tpu.memory_space<vmem>>, vector<1x4x256xf32>
    %18 = vector.shape_cast %17 : vector<1x4x256xf32> to vector<4x256xf32>
    %c0_5 = arith.constant 0 : index
    %c0_6 = arith.constant 0 : index
    %c0_7 = arith.constant 0 : index
    %19 = vector.load %arg2[%c0_5, %c0_6, %c0_7] : memref<1x4x256xf32, #tpu.memory_space<vmem>>, vector<1x4x256xf32>
    %20 = vector.shape_cast %19 : vector<1x4x256xf32> to vector<4x256xf32>
    %c-1_i32 = arith.constant -1 : i32
    %21 = vector.broadcast %c-1_i32 : i32 to vector<1x256xi32>
    %22 = arith.addi %16, %21 : vector<1x256xi32>
    %c0_i32_8 = arith.constant 0 : i32
    %23 = vector.broadcast %c0_i32_8 : i32 to vector<1x256xi32>
    %24 = arith.cmpi sge, %22, %23 : vector<1x256xi32>
    %c-1_i32_9 = arith.constant -1 : i32
    %25 = vector.broadcast %c-1_i32_9 : i32 to vector<1x256xi32>
    %26 = arith.addi %16, %25 : vector<1x256xi32>
    %c16_i32_10 = arith.constant 16 : i32
    %27 = vector.broadcast %c16_i32_10 : i32 to vector<1x256xi32>
    %28 = arith.cmpi slt, %26, %27 : vector<1x256xi32>
    %29 = arith.andi %24, %28 : vector<1x256xi1>
    %30 = arith.extui %29 : vector<1x256xi1> to vector<1x256xi32>
    %31 = arith.sitofp %30 : vector<1x256xi32> to vector<1x256xf32>
    %cst = arith.constant 0.000000e+00 : f32
    %32 = vector.broadcast %cst : f32 to vector<4x1xf32>
    %33 = vector.extract_strided_slice %18 {offsets = [0, 0], sizes = [4, 255], strides = [1, 1]} : vector<4x256xf32> to vector<4x255xf32>
    %34 = tpu.concatenate %32, %33 in 1 : vector<4x1xf32>, vector<4x255xf32> -> vector<4x256xf32>
    %35 = vector.broadcast %31 : vector<1x256xf32> to vector<4x256xf32>
    %36 = arith.mulf %34, %35 : vector<4x256xf32>
    %cst_11 = arith.constant 0.000000e+00 : f32
    %37 = vector.broadcast %cst_11 : f32 to vector<4x1xf32>
    %38 = vector.extract_strided_slice %20 {offsets = [0, 0], sizes = [4, 255], strides = [1, 1]} : vector<4x256xf32> to vector<4x255xf32>
    %39 = tpu.concatenate %37, %38 in 1 : vector<4x1xf32>, vector<4x255xf32> -> vector<4x256xf32>
    %40 = vector.broadcast %31 : vector<1x256xf32> to vector<4x256xf32>
    %41 = arith.mulf %39, %40 : vector<4x256xf32>
    %c1_i32_12 = arith.constant 1 : i32
    %42 = vector.broadcast %c1_i32_12 : i32 to vector<1x256xi32>
    %43 = arith.addi %16, %42 : vector<1x256xi32>
    %c0_i32_13 = arith.constant 0 : i32
    %44 = vector.broadcast %c0_i32_13 : i32 to vector<1x256xi32>
    %45 = arith.cmpi sge, %43, %44 : vector<1x256xi32>
    %c1_i32_14 = arith.constant 1 : i32
    %46 = vector.broadcast %c1_i32_14 : i32 to vector<1x256xi32>
    %47 = arith.addi %16, %46 : vector<1x256xi32>
    %c16_i32_15 = arith.constant 16 : i32
    %48 = vector.broadcast %c16_i32_15 : i32 to vector<1x256xi32>
    %49 = arith.cmpi slt, %47, %48 : vector<1x256xi32>
    %50 = arith.andi %45, %49 : vector<1x256xi1>
    %51 = arith.extui %50 : vector<1x256xi1> to vector<1x256xi32>
    %52 = arith.sitofp %51 : vector<1x256xi32> to vector<1x256xf32>
    %cst_16 = arith.constant 0.000000e+00 : f32
    %53 = vector.broadcast %cst_16 : f32 to vector<4x1xf32>
    %54 = vector.extract_strided_slice %18 {offsets = [0, 1], sizes = [4, 255], strides = [1, 1]} : vector<4x256xf32> to vector<4x255xf32>
    %55 = tpu.concatenate %54, %53 in 1 : vector<4x255xf32>, vector<4x1xf32> -> vector<4x256xf32>
    %56 = vector.broadcast %52 : vector<1x256xf32> to vector<4x256xf32>
    %57 = arith.mulf %55, %56 : vector<4x256xf32>
    %cst_17 = arith.constant 0.000000e+00 : f32
    %58 = vector.broadcast %cst_17 : f32 to vector<4x1xf32>
    %59 = vector.extract_strided_slice %20 {offsets = [0, 1], sizes = [4, 255], strides = [1, 1]} : vector<4x256xf32> to vector<4x255xf32>
    %60 = tpu.concatenate %59, %58 in 1 : vector<4x255xf32>, vector<4x1xf32> -> vector<4x256xf32>
    %61 = vector.broadcast %52 : vector<1x256xf32> to vector<4x256xf32>
    %62 = arith.mulf %60, %61 : vector<4x256xf32>
    %63 = tpu.concatenate %36, %41, %18, %20, %57, %62 in 0 : vector<4x256xf32>, vector<4x256xf32>, vector<4x256xf32>, vector<4x256xf32>, vector<4x256xf32>, vector<4x256xf32> -> vector<24x256xf32>
    %cst_18 = arith.constant 0.000000e+00 : f32
    %64 = vector.broadcast %cst_18 : f32 to vector<8x256xf32>
    %cst_19 = arith.constant 0.000000e+00 : f32
    %65 = vector.broadcast %cst_19 : f32 to vector<24x16xf32>
    %66 = vector.extract_strided_slice %63 {offsets = [0, 0], sizes = [24, 240], strides = [1, 1]} : vector<24x256xf32> to vector<24x240xf32>
    %67 = tpu.concatenate %65, %66 in 1 : vector<24x16xf32>, vector<24x240xf32> -> vector<24x256xf32>
    %c0_20 = arith.constant 0 : index
    %c0_21 = arith.constant 0 : index
    %c0_22 = arith.constant 0 : index
    %68 = vector.load %arg3[%c0_20, %c0_21, %c0_22] : memref<3x8x24xf32, #tpu.memory_space<vmem>>, vector<1x8x24xf32>
    %69 = vector.shape_cast %68 : vector<1x8x24xf32> to vector<8x24xf32>
    %cst_23 = arith.constant dense<0.000000e+00> : vector<8x256xf32>
    %70 = tpu.matmul %69, %67, %cst_23 {dimension_numbers = #tpu.dot_dimension_numbers<[1], [0], [0], [1], [0, 0, 1, 1], [], []>} : vector<8x24xf32>, vector<24x256xf32>, vector<8x256xf32> -> vector<8x256xf32>
    %71 = arith.addf %64, %70 : vector<8x256xf32>
    %c1 = arith.constant 1 : index
    %c0_24 = arith.constant 0 : index
    %c0_25 = arith.constant 0 : index
    %72 = vector.load %arg3[%c1, %c0_24, %c0_25] : memref<3x8x24xf32, #tpu.memory_space<vmem>>, vector<1x8x24xf32>
    %73 = vector.shape_cast %72 : vector<1x8x24xf32> to vector<8x24xf32>
    %cst_26 = arith.constant dense<0.000000e+00> : vector<8x256xf32>
    %74 = tpu.matmul %73, %63, %cst_26 {dimension_numbers = #tpu.dot_dimension_numbers<[1], [0], [0], [1], [0, 0, 1, 1], [], []>} : vector<8x24xf32>, vector<24x256xf32>, vector<8x256xf32> -> vector<8x256xf32>
    %75 = arith.addf %71, %74 : vector<8x256xf32>
    %cst_27 = arith.constant 0.000000e+00 : f32
    %76 = vector.broadcast %cst_27 : f32 to vector<24x16xf32>
    %77 = vector.extract_strided_slice %63 {offsets = [0, 16], sizes = [24, 240], strides = [1, 1]} : vector<24x256xf32> to vector<24x240xf32>
    %78 = tpu.concatenate %77, %76 in 1 : vector<24x240xf32>, vector<24x16xf32> -> vector<24x256xf32>
    %c2 = arith.constant 2 : index
    %c0_28 = arith.constant 0 : index
    %c0_29 = arith.constant 0 : index
    %79 = vector.load %arg3[%c2, %c0_28, %c0_29] : memref<3x8x24xf32, #tpu.memory_space<vmem>>, vector<1x8x24xf32>
    %80 = vector.shape_cast %79 : vector<1x8x24xf32> to vector<8x24xf32>
    %cst_30 = arith.constant dense<0.000000e+00> : vector<8x256xf32>
    %81 = tpu.matmul %80, %78, %cst_30 {dimension_numbers = #tpu.dot_dimension_numbers<[1], [0], [0], [1], [0, 0, 1, 1], [], []>} : vector<8x24xf32>, vector<24x256xf32>, vector<8x256xf32> -> vector<8x256xf32>
    %82 = arith.addf %75, %81 : vector<8x256xf32>
    %c0_31 = arith.constant 0 : index
    %c0_32 = arith.constant 0 : index
    %83 = vector.load %arg4[%c0_31, %c0_32] : memref<8x1xf32, #tpu.memory_space<vmem>>, vector<8x1xf32>
    %84 = vector.broadcast %83 : vector<8x1xf32> to vector<8x256xf32>
    %85 = arith.addf %82, %84 : vector<8x256xf32>
    %cst_33 = arith.constant 0.000000e+00 : f32
    %86 = vector.broadcast %cst_33 : f32 to vector<8x256xf32>
    %87 = arith.maximumf %85, %86 : vector<8x256xf32>
    %c0_34 = arith.constant 0 : index
    %c0_35 = arith.constant 0 : index
    %c0_36 = arith.constant 0 : index
    %88 = vector.load %arg5[%c0_34, %c0_35, %c0_36] : memref<1x8x256xf32, #tpu.memory_space<vmem>>, vector<1x8x256xf32>
    %89 = vector.shape_cast %88 : vector<1x8x256xf32> to vector<8x256xf32>
    %90 = vector.shape_cast %87 : vector<8x256xf32> to vector<1x8x256xf32>
    tpu.vector_store %arg5[%c0_34, %c0_35, %c0_36], %90 {strides = array<i32>} : memref<1x8x256xf32, #tpu.memory_space<vmem>>, vector<1x8x256xf32>,
    return
  }
  func.func @transform_0(%arg0: i32) -> (i32, i32, i32) {
    %c0_i32 = arith.constant 0 : i32
    %c0_i32_0 = arith.constant 0 : i32
    %c0_i32_1 = arith.constant 0 : i32
    return %arg0, %c0_i32, %c0_i32_0 : i32, i32, i32
  }
  func.func @transform_1(%arg0: i32) -> (i32, i32, i32) {
    %c0_i32 = arith.constant 0 : i32
    %c0_i32_0 = arith.constant 0 : i32
    %c0_i32_1 = arith.constant 0 : i32
    return %arg0, %c0_i32, %c0_i32_0 : i32, i32, i32
  }
  func.func @transform_2(%arg0: i32) -> (i32, i32, i32) {
    %c0_i32 = arith.constant 0 : i32
    %c0_i32_0 = arith.constant 0 : i32
    %c0_i32_1 = arith.constant 0 : i32
    %c0_i32_2 = arith.constant 0 : i32
    return %c0_i32, %c0_i32_0, %c0_i32_1 : i32, i32, i32
  }
  func.func @transform_3(%arg0: i32) -> (i32, i32) {
    %c0_i32 = arith.constant 0 : i32
    %c0_i32_0 = arith.constant 0 : i32
    %c0_i32_1 = arith.constant 0 : i32
    return %c0_i32, %c0_i32_0 : i32, i32
  }
  func.func @transform_4(%arg0: i32) -> (i32, i32, i32) {
    %c0_i32 = arith.constant 0 : i32
    %c0_i32_0 = arith.constant 0 : i32
    %c0_i32_1 = arith.constant 0 : i32
    return %arg0, %c0_i32, %c0_i32_0 : i32, i32, i32
  }
}

</mosaic_0001>

<llo_original>
// kernel: tpu_custom_call.1
$region0: #{tpu_custom_call.1}
  #allocation0 [shape = 'u32[]', space=smem, size = 0x4, offset = 0x4, fixed_abs, tag = 'smem constant byte address 0x4 - core index']
  #allocation1 [shape = 'u32[72,128]{1,0:T(1,128)}', space=vmem, size = 0x9000, scoped, tag = 'internal scratch']
  %s0 = inlined_call_operand.hbm [shape: f32[2,4,256], index: 0, kind: input, shape index: {}]
  %s1 = inlined_call_operand.hbm [shape: f32[2,4,256], index: 1, kind: input, shape index: {}]
  %s2 = inlined_call_operand.hbm [shape: f32[3,8,24], index: 2, kind: input, shape index: {}]
  %s3 = inlined_call_operand.vmem [shape: f32[8,1], index: 3, kind: input, shape index: {}]
  %s4 = inlined_call_operand.hbm [shape: f32[2,8,256], index: 4, kind: output, shape index: {}]
  %s5 = sld [smem:[#allocation0]]
  $region61: #{tpu_custom_call.1} parent=0
    _
  %s7 = ssub.s32 1, %s5
  %s8 = scalar_select 0, %s7, %s5
  $region1: #{tpu_custom_call.1} parent=0
    #allocation2 [shape = 'u8[8192]{0}', space=vmem, size = 0x2000, scoped, tag = 'input window, operand 0']
    #allocation3 [shape = 's32[2]{0}', space=sflag, size = 0x8, scoped, tag = 'scoped memory for tpu_custom_call.1']
    #allocation4 [shape = 's32[2]{0}', space=sflag, size = 0x8, scoped, tag = 'scoped memory for tpu_custom_call.1']
    #allocation5 [shape = 'u8[8192]{0}', space=vmem, size = 0x2000, scoped, tag = 'input window, operand 1']
    #allocation6 [shape = 's32[2]{0}', space=sflag, size = 0x8, scoped, tag = 'scoped memory for tpu_custom_call.1']
    #allocation7 [shape = 'u8[12288]{0}', space=vmem, size = 0x3000, scoped, tag = 'input window, operand 2, single buffered']
    #allocation8 [shape = 'u8[16384]{0}', space=vmem, size = 0x4000, scoped, tag = 'output window, operand 0']
    %9 = vsyncpa [#allocation3], 0
    %s10 = scalar_lea.sflag [#allocation3], 1
    %11 = vsyncpa %s10, 0
    %12 = vsyncpa [#allocation6], 0
    %s13 = scalar_lea.sflag [#allocation6], 1
    %14 = vsyncpa %s13, 0
    %15 = vsyncpa [#allocation4], 0
    %s16 = scalar_lea.sflag [#allocation4], 1
    %17 = vsyncpa %s16, 0
    loop: start=0, step=1, limit=4
    $region2: #{tpu_custom_call.1} parent=1 // loop_pre_header
      _
    $region3: #{tpu_custom_call.1} parent=1 // loop_header
      %s19 = sphi 0, %s23
      %p20 = scmp.ge.s32.totalorder %s19, 4
      %s29 = sphi 0, %s31
      %s32 = sphi 0, %s29
      %s33 = sphi 0, %s32
      %s49 = sphi 0, %s33
      %s55 = sphi 0, %s57
      %s58 = sphi 0, %s55
      %s59 = sphi 0, %s58
      %s75 = sphi 0, %s59
      %s79 = sphi 0, %s79
      %s81 = sphi 0, %s79
      %s82 = sphi 0, %s81
      %s96 = sphi 0, %s82
      %s100 = sphi 0, %s100
      %s102 = sphi 0, %s100
      %s103 = sphi 0, %s102
      %s117 = sphi 0, %s103
      %s123 = sphi 0, %s125
      %s126 = sphi 0, %s123
      %s127 = sphi 0, %s126
      %s143 = sphi 0, %s127
    $region4: #{tpu_custom_call.1} parent=1 // loop_header_branch
      %22 = sbr.rel (%p20) target = $region8
    $region5: #{tpu_custom_call.1} parent=1 // loop_body
      %s24 = ssub.s32 %s19, 1
      %s25 = ssub.s32 %s19, 2
      %s26 = sadd.s32 %s19, 1
      %s27 = ssub.s32 %s19, %s26
      %p28 = scmp.eq.s32.totalorder %s27, 0
      %s30 = sadd.s32 %s29, 1
      %s31 = scalar_select %p28, %s29, %s30
      %p34 = pneg %p28
      %p35 = scmp.eq.s32.totalorder %s19, 1
      %p36 = por %p34, %p35
      %p37 = scmp.ne.s32.totalorder %s29, %s32
      %p38 = scmp.eq.s32.totalorder %s19, 0
      %p39 = por %p37, %p38
      %p40 = scmp.ne.s32.totalorder %s29, %s32
      %p41 = scmp.eq.s32.totalorder %s24, 1
      %p42 = por %p40, %p41
      %p43 = scmp.ne.s32.totalorder %s32, %s33
      %p44 = scmp.eq.s32.totalorder %s24, 0
      %p45 = por %p43, %p44
      %p46 = scmp.ne.s32.totalorder %s32, %s33
      %p47 = scmp.eq.s32.totalorder %s25, 1
      %p48 = por %p46, %p47
      %p50 = scmp.ne.s32.totalorder %s33, %s49
      %p51 = scmp.eq.s32.totalorder %s25, 0
      %p52 = por %p50, %p51
      %s53 = ssub.s32 %s19, %s26
      %p54 = scmp.eq.s32.totalorder %s53, 0
      %s56 = sadd.s32 %s55, 1
      %s57 = scalar_select %p54, %s55, %s56
      %p60 = pneg %p54
      %p61 = scmp.eq.s32.totalorder %s19, 1
      %p62 = por %p60, %p61
      %p63 = scmp.ne.s32.totalorder %s55, %s58
      %p64 = scmp.eq.s32.totalorder %s19, 0
      %p65 = por %p63, %p64
      %p66 = scmp.ne.s32.totalorder %s55, %s58
      %p67 = scmp.eq.s32.totalorder %s24, 1
      %p68 = por %p66, %p67
      %p69 = scmp.ne.s32.totalorder %s58, %s59
      %p70 = scmp.eq.s32.totalorder %s24, 0
      %p71 = por %p69, %p70
      %p72 = scmp.ne.s32.totalorder %s58, %s59
      %p73 = scmp.eq.s32.totalorder %s25, 1
      %p74 = por %p72, %p73
      %p76 = scmp.ne.s32.totalorder %s59, %s75
      %p77 = scmp.eq.s32.totalorder %s25, 0
      %p78 = por %p76, %p77
      %s80 = sadd.s32 %s79, 1
      %p83 = scmp.eq.s32.totalorder %s19, 1
      %p84 = scmp.ne.s32.totalorder %s79, %s81
      %p85 = scmp.eq.s32.totalorder %s19, 0
      %p86 = por %p84, %p85
      %p87 = scmp.ne.s32.totalorder %s79, %s81
      %p88 = scmp.eq.s32.totalorder %s24, 1
      %p89 = por %p87, %p88
      %p90 = scmp.ne.s32.totalorder %s81, %s82
      %p91 = scmp.eq.s32.totalorder %s24, 0
      %p92 = por %p90, %p91
      %p93 = scmp.ne.s32.totalorder %s81, %s82
      %p94 = scmp.eq.s32.totalorder %s25, 1
      %p95 = por %p93, %p94
      %p97 = scmp.ne.s32.totalorder %s82, %s96
      %p98 = scmp.eq.s32.totalorder %s25, 0
      %p99 = por %p97, %p98
      %s101 = sadd.s32 %s100, 1
      %p104 = scmp.eq.s32.totalorder %s19, 1
      %p105 = scmp.ne.s32.totalorder %s100, %s102
      %p106 = scmp.eq.s32.totalorder %s19, 0
      %p107 = por %p105, %p106
      %p108 = scmp.ne.s32.totalorder %s100, %s102
      %p109 = scmp.eq.s32.totalorder %s24, 1
      %p110 = por %p108, %p109
      %p111 = scmp.ne.s32.totalorder %s102, %s103
      %p112 = scmp.eq.s32.totalorder %s24, 0
      %p113 = por %p111, %p112
      %p114 = scmp.ne.s32.totalorder %s102, %s103
      %p115 = scmp.eq.s32.totalorder %s25, 1
      %p116 = por %p114, %p115
      %p118 = scmp.ne.s32.totalorder %s103, %s117
      %p119 = scmp.eq.s32.totalorder %s25, 0
      %p120 = por %p118, %p119
      %s121 = ssub.s32 %s19, %s26
      %p122 = scmp.eq.s32.totalorder %s121, 0
      %s124 = sadd.s32 %s123, 1
      %s125 = scalar_select %p122, %s123, %s124
      %p128 = pneg %p122
      %p129 = scmp.eq.s32.totalorder %s19, 1
      %p130 = por %p128, %p129
      %p131 = scmp.ne.s32.totalorder %s123, %s126
      %p132 = scmp.eq.s32.totalorder %s19, 0
      %p133 = por %p131, %p132
      %p134 = scmp.ne.s32.totalorder %s123, %s126
      %p135 = scmp.eq.s32.totalorder %s24, 1
      %p136 = por %p134, %p135
      %p137 = scmp.ne.s32.totalorder %s126, %s127
      %p138 = scmp.eq.s32.totalorder %s24, 0
      %p139 = por %p137, %p138
      %p140 = scmp.ne.s32.totalorder %s126, %s127
      %p141 = scmp.eq.s32.totalorder %s25, 1
      %p142 = por %p140, %p141
      %p144 = scmp.ne.s32.totalorder %s127, %s143
      %p145 = scmp.eq.s32.totalorder %s25, 0
      %p146 = por %p144, %p145
      %p147 = scmp.le.s32.totalorder 1, %s19
      %p148 = scmp.lt.s32.totalorder %s19, 3
      %p149 = pnand %p147, %p148
      %p150 = pneg %p149
      // Predicated region
      $region9: #{tpu_custom_call.1} parent=5 // pred_check
        _
      $region10: #{tpu_custom_call.1} parent=5 // pred_check_branch
        %152 = sbr.rel (%p149) target = $region12
      $region11: #{tpu_custom_call.1} parent=5 // pred_region
        %s153 = ssub.s32 %s19, 1
        // Predicated region
        $region13: #{tpu_custom_call.1} parent=11 // pred_check
          %p154 = pneg %p92
        $region14: #{tpu_custom_call.1} parent=11 // pred_check_branch
          %156 = sbr.rel (%p154) target = $region16
        $region15: #{tpu_custom_call.1} parent=11 // pred_region
          %158 = vsyncadd [#allocation6], 0
          %s159 = sshll.u32 %s2, 4
          %s160 = int_to_ptr.hbm [resolvable:$true] %s159
          %s161 = sshll.u32 [#allocation7], 4
          %s162 = int_to_ptr.vmem [resolvable:$true] %s161
          %167 = dma.hbm_to_vmem [thread:$0]  %s160, 384, %s162, [#allocation6], 128, 128, 8
        $region16: #{tpu_custom_call.1} parent=11 // pred_fallthru
          _
        // Predicated region
        $region17: #{tpu_custom_call.1} parent=11 // pred_check
          %p168 = pneg %p113
        $region18: #{tpu_custom_call.1} parent=11 // pred_check_branch
          %170 = sbr.rel (%p168) target = $region20
        $region19: #{tpu_custom_call.1} parent=11 // pred_region
          _
        $region20: #{tpu_custom_call.1} parent=11 // pred_fallthru
          _
      $region12: #{tpu_custom_call.1} parent=5 // pred_fallthru
        _
      %p171 = scmp.lt.s32.totalorder %s19, 2
      // Predicated region
      $region21: #{tpu_custom_call.1} parent=5 // pred_check
        %p172 = pneg %p171
      $region22: #{tpu_custom_call.1} parent=5 // pred_check_branch
        %174 = sbr.rel (%p172) target = $region24
      $region23: #{tpu_custom_call.1} parent=5 // pred_region
        // Predicated region
        $region25: #{tpu_custom_call.1} parent=23 // pred_check
          %p175 = pneg %p39
        $region26: #{tpu_custom_call.1} parent=23 // pred_check_branch
          %177 = sbr.rel (%p175) target = $region28
        $region27: #{tpu_custom_call.1} parent=23 // pred_region
          %s178 = sand.u32 %s29, 1
          %s179 = scalar_lea.sflag [#allocation3], %s178
          %s180 = sand.u32 %s29, 1
          %s181 = smul.addr %s180, 8
          %s182 = scalar_lea.vmem [#allocation2], %s181
          %184 = vsyncadd %s179, 0
          %s185 = smul.addr %s19, 2
          %s186 = smul.addr %s185, 4
          %s187 = scalar_lea.hbm %s0, %s186
          %s189 = sshll.u32 %s187, 4
          %s190 = int_to_ptr.hbm [resolvable:$true] %s189
          %s191 = sshll.u32 %s182, 4
          %s192 = int_to_ptr.vmem [resolvable:$true] %s191
          %194 = dma.hbm_to_vmem [thread:$0]  %s190, 128, %s192, %s179
        $region28: #{tpu_custom_call.1} parent=23 // pred_fallthru
          _
        // Predicated region
        $region29: #{tpu_custom_call.1} parent=23 // pred_check
          %p195 = pneg %p65
        $region30: #{tpu_custom_call.1} parent=23 // pred_check_branch
          %197 = sbr.rel (%p195) target = $region32
        $region31: #{tpu_custom_call.1} parent=23 // pred_region
          %s198 = sand.u32 %s19, 1
          %s199 = scalar_lea.sflag [#allocation6], %s198
          %s200 = sand.u32 %s55, 1
          %s201 = smul.addr %s200, 8
          %s202 = scalar_lea.vmem [#allocation5], %s201
          %204 = vsyncadd %s199, 0
          %s205 = smul.addr %s19, 2
          %s206 = smul.addr %s205, 4
          %s207 = scalar_lea.hbm %s1, %s206
          %s209 = sshll.u32 %s207, 4
          %s210 = int_to_ptr.hbm [resolvable:$true] %s209
          %s211 = sshll.u32 %s202, 4
          %s212 = int_to_ptr.vmem [resolvable:$true] %s211
          %214 = dma.hbm_to_vmem [thread:$0]  %s210, 128, %s212, %s199
        $region32: #{tpu_custom_call.1} parent=23 // pred_fallthru
          _
      $region24: #{tpu_custom_call.1} parent=5 // pred_fallthru
        _
      %p215 = scmp.le.s32.totalorder 1, %s19
      %p216 = scmp.lt.s32.totalorder %s19, 3
      %p217 = pnand %p215, %p216
      %p218 = pneg %p217
      // Predicated region
      $region33: #{tpu_custom_call.1} parent=5 // pred_check
        _
      $region34: #{tpu_custom_call.1} parent=5 // pred_check_branch
        %220 = sbr.rel (%p217) target = $region36
      $region35: #{tpu_custom_call.1} parent=5 // pred_region
        %s221 = ssub.s32 %s19, 1
        %s222 = sand.u32 %s32, 1
        %s223 = scalar_lea.sflag [#allocation3], %s222
        %s224 = sand.u32 %s32, 1
        %s225 = smul.addr %s224, 8
        %s226 = scalar_lea.vmem [#allocation2], %s225
        // Predicated region
        $region37: #{tpu_custom_call.1} parent=35 // pred_check
          %p227 = pneg %p45
        $region38: #{tpu_custom_call.1} parent=35 // pred_check_branch
          %229 = sbr.rel (%p227) target = $region40
        $region39: #{tpu_custom_call.1} parent=35 // pred_region
          %231 = dma.done %s223, 128
        $region40: #{tpu_custom_call.1} parent=35 // pred_fallthru
          _
        %s232 = sand.u32 %s24, 1
        %s233 = scalar_lea.sflag [#allocation6], %s232
        %s234 = sand.u32 %s58, 1
        %s235 = smul.addr %s234, 8
        %s236 = scalar_lea.vmem [#allocation5], %s235
        // Predicated region
        $region41: #{tpu_custom_call.1} parent=35 // pred_check
          %p237 = pneg %p71
        $region42: #{tpu_custom_call.1} parent=35 // pred_check_branch
          %239 = sbr.rel (%p237) target = $region44
        $region43: #{tpu_custom_call.1} parent=35 // pred_region
          %241 = dma.done %s233, 128
        $region44: #{tpu_custom_call.1} parent=35 // pred_fallthru
          _
        // Predicated region
        $region45: #{tpu_custom_call.1} parent=35 // pred_check
          %p242 = pneg %p92
        $region46: #{tpu_custom_call.1} parent=35 // pred_check_branch
          %244 = sbr.rel (%p242) target = $region48
        $region47: #{tpu_custom_call.1} parent=35 // pred_region
          %246 = dma.done [#allocation6], 384
        $region48: #{tpu_custom_call.1} parent=35 // pred_fallthru
          _
        %s247 = sand.u32 %s32, 1
        %s248 = scalar_lea.sflag [#allocation3], %s247
        %s249 = sand.u32 %s32, 1
        %s250 = smul.addr %s249, 8
        %s251 = scalar_lea.vmem [#allocation2], %s250
        %p252 = pneg %p45
        %p253 = pneg %p42
        %s254 = sand.u32 %s24, 1
        %s255 = scalar_lea.sflag [#allocation6], %s254
        %s256 = sand.u32 %s58, 1
        %s257 = smul.addr %s256, 8
        %s258 = scalar_lea.vmem [#allocation5], %s257
        %p259 = pneg %p71
        %p260 = pneg %p68
        %p261 = pneg %p92
        %p262 = pneg %p89
        %p263 = pneg %p113
        %p264 = pneg %p110
        %p265 = pneg %p139
        %p266 = pneg %p136
        %s267 = sand.u32 %s126, 1
        %s268 = scalar_lea.sflag [#allocation4], %s267
        %s269 = sand.u32 %s126, 1
        %s270 = smul.addr %s269, 16
        %s271 = scalar_lea.vmem [#allocation8], %s270
        %v272 = vlaneseq
        %v273 = vand.u32 %v272, 127
        %v274 = vadd.s32 %v273, 128
        %vm275 = vcmp.lt.s32.totalorder %v273, 0
        %v276 = vsub.s32 0, %v273
        %v277 = vsel %vm275, %v276, %v273
        %v278 = vshrl.u32 %v277, 4
        %v279 = vand.u32 %v277, 15
        %v280 = vsub.s32 0, %v279
        %v281 = vsel %vm275, %v280, %v279
        %vm282 = vcmp.lt.s32.totalorder %v274, 0
        %v283 = vsub.s32 0, %v274
        %v284 = vsel %vm282, %v283, %v274
        %v285 = vshrl.u32 %v284, 4
        %v286 = vand.u32 %v284, 15
        %v287 = vsub.s32 0, %v286
        %v288 = vsel %vm282, %v287, %v286
        %vm289 = vcmp.ne.s32.totalorder %v281, 0
        %vm290 = vcmp.ne.s32.totalorder %v288, 0
        %vm291 = vcmp.lt.s32.totalorder %v281, 0
        %vm292 = vcmp.lt.s32.totalorder %v288, 0
        %vm293 = vmand %vm291, %vm289
        %vm294 = vmand %vm292, %vm290
        %v295 = vadd.s32 %v281, 16
        %v296 = vadd.s32 %v288, 16
        %v297 = vsel %vm293, %v295, %v281
        %v298 = vsel %vm294, %v296, %v288
        %v299 = vld [vmem:[%s226] sm:$0xff]
        %v300 = vld [vmem:[%s236] sm:$0xff]
        %v301 = vadd.s32 %v297, 4294967295
        %v302 = vadd.s32 %v298, 4294967295
        %vm303 = vcmp.ge.s32.totalorder %v301, 0
        %vm304 = vcmp.ge.s32.totalorder %v302, 0
        %vm305 = vcmp.lt.s32.totalorder %v301, 16
        %vm306 = vcmp.lt.s32.totalorder %v302, 16
        %vm307 = vmand %vm303, %vm305
        %vm308 = vmand %vm304, %vm306
        %v309 = vsel %vm307, 1, 0
        %v310 = vsel %vm308, 1, 0
        %v311 = vcvt.s32.f32 %v309
        %v312 = vcvt.s32.f32 %v310
        %314 = vst [vmem:[#allocation1] ss:$2 sm:$0xff] %v299
        %v315 = vld.sshfl [vmem:[#allocation1] sm:$0xff pattern:$0x75316420]
        %v316 = vld.sshfl [vmem:[#allocation1 + $0x8] sm:$0xff pattern:$0x75316420]
        %317 = vrot.lane.b32.xlu0 %v315, 1
        %v318 = vpop.permute.xlu0 %317
        %319 = vrot.lane.b32.xlu0 %v316, 1
        %v320 = vpop.permute.xlu0 %319
        %vm321 = vcmask 7168
        %v322 = vsel %vm321, %v318, %v320
        %v325 = vsel %vm321, 0.0, %v318
        %v326 = vmul.f32 %v325, %v311
        %v327 = vmul.f32 %v322, %v312
        %329 = vst [vmem:[#allocation1] ss:$2 sm:$0xff] %v300
        %v330 = vld.sshfl [vmem:[#allocation1] sm:$0xff pattern:$0x75316420]
        %v331 = vld.sshfl [vmem:[#allocation1 + $0x8] sm:$0xff pattern:$0x75316420]
        %332 = vrot.lane.b32.xlu0 %v330, 1
        %v333 = vpop.permute.xlu0 %332
        %334 = vrot.lane.b32.xlu0 %v331, 1
        %v335 = vpop.permute.xlu0 %334
        %v336 = vsel %vm321, %v333, %v335
        %v339 = vsel %vm321, 0.0, %v333
        %v340 = vmul.f32 %v339, %v311
        %v341 = vmul.f32 %v336, %v312
        %v342 = vadd.s32 %v297, 1
        %v343 = vadd.s32 %v298, 1
        %vm344 = vcmp.ge.s32.totalorder %v342, 0
        %vm345 = vcmp.ge.s32.totalorder %v343, 0
        %vm346 = vcmp.lt.s32.totalorder %v342, 16
        %vm347 = vcmp.lt.s32.totalorder %v343, 16
        %vm348 = vmand %vm344, %vm346
        %vm349 = vmand %vm345, %vm347
        %v350 = vsel %vm348, 1, 0
        %v351 = vsel %vm349, 1, 0
        %v352 = vcvt.s32.f32 %v350
        %v353 = vcvt.s32.f32 %v351
        %354 = vst [vmem:[#allocation1] ss:$2 sm:$0xff] %v299
        %v355 = vld.sshfl [vmem:[#allocation1] sm:$0xff pattern:$0x75316420]
        %v356 = vld.sshfl [vmem:[#allocation1 + $0x8] sm:$0xff pattern:$0x75316420]
        %357 = vrot.lane.b32.xlu0 %v355, 127
        %v358 = vpop.permute.xlu0 %357
        %359 = vrot.lane.b32.xlu0 %v356, 127
        %v360 = vpop.permute.xlu0 %359
        %vm361 = vcmask 1039360
        %v362 = vsel %vm361, %v358, %v360
        %v365 = vsel %vm361, %v360, 0.0
        %v366 = vmul.f32 %v362, %v352
        %v367 = vmul.f32 %v365, %v353
        %368 = vst [vmem:[#allocation1] ss:$2 sm:$0xff] %v300
        %v369 = vld.sshfl [vmem:[#allocation1] sm:$0xff pattern:$0x75316420]
        %v370 = vld.sshfl [vmem:[#allocation1 + $0x8] sm:$0xff pattern:$0x75316420]
        %371 = vrot.lane.b32.xlu0 %v369, 127
        %v372 = vpop.permute.xlu0 %371
        %373 = vrot.lane.b32.xlu0 %v370, 127
        %v374 = vpop.permute.xlu0 %373
        %v375 = vsel %vm361, %v372, %v374
        %v378 = vsel %vm361, %v374, 0.0
        %v379 = vmul.f32 %v375, %v352
        %v380 = vmul.f32 %v378, %v353
        %v383 = vrot.slane %v340, 4
        %v384 = vrot.slane %v341, 4
        %387 = vst [vmem:[#allocation1] ss:$2 sm:$0xff] %v299
        %v388 = vld.sshfl [vmem:[#allocation1] sm:$0xff pattern:$0x75316420]
        %v389 = vld.sshfl [vmem:[#allocation1 + $0x8] sm:$0xff pattern:$0x75316420]
        %s392 = scalar_lea.vmem [#allocation1], 1
        %393 = vst [vmem:[%s392] ss:$2 sm:$0xff] %v300
        %v394 = vld.sshfl [vmem:[#allocation1] sm:$0xff pattern:$0x75316420]
        %v395 = vld.sshfl [vmem:[#allocation1 + $0x8] sm:$0xff pattern:$0x75316420]
        %v400 = vrot.slane %v379, 4
        %v401 = vrot.slane %v380, 4
        %vm404 = vcmask 1043456
        %v405 = vsel %vm404, %v326, %v383
        %v406 = vsel %vm404, %v327, %v384
        %v407 = vsel %vm404, %v388, %v394
        %v408 = vsel %vm404, %v389, %v395
        %v409 = vsel %vm404, %v366, %v400
        %v410 = vsel %vm404, %v367, %v401
        %417 = vrot.lane.b32.xlu0 %v405, 16
        %v418 = vpop.permute.xlu0 %417
        %419 = vrot.lane.b32.xlu0 %v406, 16
        %v420 = vpop.permute.xlu0 %419
        %421 = vrot.lane.b32.xlu0 %v407, 16
        %v422 = vpop.permute.xlu0 %421
        %423 = vrot.lane.b32.xlu0 %v408, 16
        %v424 = vpop.permute.xlu0 %423
        %425 = vrot.lane.b32.xlu0 %v409, 16
        %v426 = vpop.permute.xlu0 %425
        %427 = vrot.lane.b32.xlu0 %v410, 16
        %v428 = vpop.permute.xlu0 %427
        %vm429 = vcmask 130048
        %v430 = vsel %vm429, %v418, %v420
        %v431 = vsel %vm429, %v422, %v424
        %v432 = vsel %vm429, %v426, %v428
        %v439 = vsel %vm429, 0.0, %v418
        %v440 = vsel %vm429, 0.0, %v422
        %v441 = vsel %vm429, 0.0, %v426
        %v442 = vld [vmem:[#allocation7] sm:$0xff]
        %s443 = scalar_lea.vmem [#allocation7], 8
        %v444 = vld [vmem:[%s443] sm:$0xff]
        %vm445 = vcmask 195584
        %v447 = vsel %vm445, %v444, 0
        %449 = vmatpush.msra.mxu0 0.0
        %450 = vmatpush.msra.mxu0 0.0
        %451 = vmatpush.msra.mxu0 0.0
        %452 = vmatpush.msra.mxu0 0.0
        %453 = vmatpush.msra.mxu0 0.0
        %454 = vmatpush.msra.mxu0 0.0
        %455 = vmatpush.msra.mxu0 0.0
        %456 = vmatpush.msra.mxu0 0.0
        %457 = vmatpush.msra.mxu0 0.0
        %458 = vmatpush.msra.mxu0 0.0
        %459 = vmatpush.msra.mxu0 0.0
        %460 = vmatpush.msra.mxu0 0.0
        %461 = vmatpush.msra.mxu0 0.0
        %462 = vmatpush.msra.mxu0 %v409
        %463 = vmatpush.msra.mxu0 %v407
        %464 = vmatpush.msra.mxu0 %v405
        %465 = vmatmul.f32.gmra.mxu0 %v447
        %v466 = vpop.f32.mrf.mxu0
        %v467 = vadd.f32 0.0, %v466
        %468 = vdwg.mxu0
        %469 = vmatpush.msra.mxu0 0.0
        %470 = vmatpush.msra.mxu0 0.0
        %471 = vmatpush.msra.mxu0 0.0
        %472 = vmatpush.msra.mxu0 0.0
        %473 = vmatpush.msra.mxu0 0.0
        %474 = vmatpush.msra.mxu0 0.0
        %475 = vmatpush.msra.mxu0 0.0
        %476 = vmatpush.msra.mxu0 0.0
        %477 = vmatpush.msra.mxu0 0.0
        %478 = vmatpush.msra.mxu0 0.0
        %479 = vmatpush.msra.mxu0 0.0
        %480 = vmatpush.msra.mxu0 0.0
        %481 = vmatpush.msra.mxu0 0.0
        %482 = vmatpush.msra.mxu0 %v410
        %483 = vmatpush.msra.mxu0 %v408
        %484 = vmatpush.msra.mxu0 %v406
        %485 = vmatmul.f32.gmra.mxu0 %v447
        %v486 = vpop.f32.mrf.mxu0
        %v487 = vadd.f32 0.0, %v486
        %488 = vdwg.mxu0
        %v490 = vsel %vm445, %v442, 0
        %492 = vmatpush.msra.mxu0 0.0
        %493 = vmatpush.msra.mxu0 0.0
        %494 = vmatpush.msra.mxu0 0.0
        %495 = vmatpush.msra.mxu0 0.0
        %496 = vmatpush.msra.mxu0 0.0
        %497 = vmatpush.msra.mxu0 0.0
        %498 = vmatpush.msra.mxu0 0.0
        %499 = vmatpush.msra.mxu0 0.0
        %500 = vmatpush.msra.mxu0 0.0
        %501 = vmatpush.msra.mxu0 0.0
        %502 = vmatpush.msra.mxu0 0.0
        %503 = vmatpush.msra.mxu0 0.0
        %504 = vmatpush.msra.mxu0 0.0
        %505 = vmatpush.msra.mxu0 %v441
        %506 = vmatpush.msra.mxu0 %v440
        %507 = vmatpush.msra.mxu0 %v439
        %508 = vmatmul.f32.gmra.mxu0 %v490
        %v509 = vpop.f32.mrf.mxu0
        %v510 = vadd.f32 %v467, %v509
        %511 = vdwg.mxu0
        %512 = vmatpush.msra.mxu0 0.0
        %513 = vmatpush.msra.mxu0 0.0
        %514 = vmatpush.msra.mxu0 0.0
        %515 = vmatpush.msra.mxu0 0.0
        %516 = vmatpush.msra.mxu0 0.0
        %517 = vmatpush.msra.mxu0 0.0
        %518 = vmatpush.msra.mxu0 0.0
        %519 = vmatpush.msra.mxu0 0.0
        %520 = vmatpush.msra.mxu0 0.0
        %521 = vmatpush.msra.mxu0 0.0
        %522 = vmatpush.msra.mxu0 0.0
        %523 = vmatpush.msra.mxu0 0.0
        %524 = vmatpush.msra.mxu0 0.0
        %525 = vmatpush.msra.mxu0 %v432
        %526 = vmatpush.msra.mxu0 %v431
        %527 = vmatpush.msra.mxu0 %v430
        %528 = vmatmul.f32.gmra.mxu0 %v490
        %v529 = vpop.f32.mrf.mxu0
        %v530 = vadd.f32 %v487, %v529
        %531 = vdwg.mxu0
        %532 = vrot.lane.b32.xlu0 %v405, 112
        %v533 = vpop.permute.xlu0 %532
        %534 = vrot.lane.b32.xlu0 %v406, 112
        %v535 = vpop.permute.xlu0 %534
        %536 = vrot.lane.b32.xlu0 %v407, 112
        %v537 = vpop.permute.xlu0 %536
        %538 = vrot.lane.b32.xlu0 %v408, 112
        %v539 = vpop.permute.xlu0 %538
        %540 = vrot.lane.b32.xlu0 %v409, 112
        %v541 = vpop.permute.xlu0 %540
        %542 = vrot.lane.b32.xlu0 %v410, 112
        %v543 = vpop.permute.xlu0 %542
        %vm544 = vcmask 916480
        %v545 = vsel %vm544, %v533, %v535
        %v546 = vsel %vm544, %v537, %v539
        %v547 = vsel %vm544, %v541, %v543
        %v554 = vsel %vm544, %v535, 0.0
        %v555 = vsel %vm544, %v539, 0.0
        %v556 = vsel %vm544, %v543, 0.0
        %s557 = scalar_lea.vmem [#allocation7], 16
        %v558 = vld [vmem:[%s557] sm:$0xff]
        %v560 = vsel %vm445, %v558, 0
        %562 = vmatpush.msra.mxu0 0.0
        %563 = vmatpush.msra.mxu0 0.0
        %564 = vmatpush.msra.mxu0 0.0
        %565 = vmatpush.msra.mxu0 0.0
        %566 = vmatpush.msra.mxu0 0.0
        %567 = vmatpush.msra.mxu0 0.0
        %568 = vmatpush.msra.mxu0 0.0
        %569 = vmatpush.msra.mxu0 0.0
        %570 = vmatpush.msra.mxu0 0.0
        %571 = vmatpush.msra.mxu0 0.0
        %572 = vmatpush.msra.mxu0 0.0
        %573 = vmatpush.msra.mxu0 0.0
        %574 = vmatpush.msra.mxu0 0.0
        %575 = vmatpush.msra.mxu0 %v547
        %576 = vmatpush.msra.mxu0 %v546
        %577 = vmatpush.msra.mxu0 %v545
        %578 = vmatmul.f32.gmra.mxu0 %v560
        %v579 = vpop.f32.mrf.mxu0
        %v580 = vadd.f32 0.0, %v579
        %581 = vdwg.mxu0
        %582 = vmatpush.msra.mxu0 0.0
        %583 = vmatpush.msra.mxu0 0.0
        %584 = vmatpush.msra.mxu0 0.0
        %585 = vmatpush.msra.mxu0 0.0
        %586 = vmatpush.msra.mxu0 0.0
        %587 = vmatpush.msra.mxu0 0.0
        %588 = vmatpush.msra.mxu0 0.0
        %589 = vmatpush.msra.mxu0 0.0
        %590 = vmatpush.msra.mxu0 0.0
        %591 = vmatpush.msra.mxu0 0.0
        %592 = vmatpush.msra.mxu0 0.0
        %593 = vmatpush.msra.mxu0 0.0
        %594 = vmatpush.msra.mxu0 0.0
        %595 = vmatpush.msra.mxu0 %v556
        %596 = vmatpush.msra.mxu0 %v555
        %597 = vmatpush.msra.mxu0 %v554
        %598 = vmatmul.f32.gmra.mxu0 %v560
        %v599 = vpop.f32.mrf.mxu0
        %v600 = vadd.f32 0.0, %v599
        %601 = vdwg.mxu0
        %v602 = vadd.f32 %v510, %v580
        %v603 = vadd.f32 %v530, %v600
        %v604 = vld [vmem:[%s3] sm:$0xff]
        %606 = vset.pattern.permute.xlu0 0
        %607 = vperm.xlu0 %606, %v604
        %v608 = vpop.permute.xlu0 %607
        %v610 = vadd.f32 %v602, %v608
        %v611 = vadd.f32 %v603, %v608
        %v612 = vmax.f32 %v610, 0.0
        %v613 = vmax.f32 %v611, 0.0
        %614 = vst [vmem:[%s271] sm:$0xff] %v612
        %615 = vst [vmem:[%s271 + $0x8] sm:$0xff] %v613
        %s616 = sand.u32 %s126, 1
        %s617 = scalar_lea.sflag [#allocation4], %s616
        %s618 = sand.u32 %s126, 1
        %s619 = smul.addr %s618, 16
        %s620 = scalar_lea.vmem [#allocation8], %s619
        // Predicated region
        $region49: #{tpu_custom_call.1} parent=35 // pred_check
          %p621 = pneg %p136
        $region50: #{tpu_custom_call.1} parent=35 // pred_check_branch
          %623 = sbr.rel (%p621) target = $region52
        $region51: #{tpu_custom_call.1} parent=35 // pred_region
          %625 = vsyncadd %s617, 0
          %s626 = smul.addr %s24, 2
          %s627 = smul.addr %s626, 8
          %s628 = scalar_lea.hbm %s4, %s627
          %s630 = sshll.u32 %s620, 4
          %s631 = int_to_ptr.vmem [resolvable:$true] %s630
          %s632 = sshll.u32 %s628, 4
          %s633 = int_to_ptr.hbm [resolvable:$true] %s632
          %635 = dma.vmem_to_hbm [thread:$0]  %s631, 256, %s633, %s617
        $region52: #{tpu_custom_call.1} parent=35 // pred_fallthru
          _
      $region36: #{tpu_custom_call.1} parent=5 // pred_fallthru
        _
      %p636 = scmp.le.s32.totalorder 2, %s19
      // Predicated region
      $region53: #{tpu_custom_call.1} parent=5 // pred_check
        %p637 = pneg %p636
      $region54: #{tpu_custom_call.1} parent=5 // pred_check_branch
        %639 = sbr.rel (%p637) target = $region56
      $region55: #{tpu_custom_call.1} parent=5 // pred_region
        %s640 = ssub.s32 %s19, 2
        // Predicated region
        $region57: #{tpu_custom_call.1} parent=55 // pred_check
          %p641 = pneg %p142
        $region58: #{tpu_custom_call.1} parent=55 // pred_check_branch
          %643 = sbr.rel (%p641) target = $region60
        $region59: #{tpu_custom_call.1} parent=55 // pred_region
          %s644 = sand.u32 %s127, 1
          %s645 = scalar_lea.sflag [#allocation4], %s644
          %s646 = sand.u32 %s127, 1
          %s647 = smul.addr %s646, 16
          %s648 = scalar_lea.vmem [#allocation8], %s647
          %650 = dma.done %s645, 256
        $region60: #{tpu_custom_call.1} parent=55 // pred_fallthru
          _
      $region56: #{tpu_custom_call.1} parent=5 // pred_fallthru
        _
    $region6: #{tpu_custom_call.1} parent=1 // loop_footer
      %s23 = sadd.s32 1, %s19
    $region7: #{tpu_custom_call.1} parent=1 // loop_footer_branch
      %18 = sbr.rel target = $region3
    $region8: #{tpu_custom_call.1} parent=1 // loop_exit
      _
    %651 = vsyncpa [#allocation3], 1
    %s652 = scalar_lea.sflag [#allocation3], 1
    %653 = vsyncpa %s652, 1
    %654 = vsyncpa [#allocation6], 1
    %s655 = scalar_lea.sflag [#allocation6], 1
    %656 = vsyncpa %s655, 1
    %657 = vsyncpa [#allocation4], 1
    %s658 = scalar_lea.sflag [#allocation4], 1
    %659 = vsyncpa %s658, 1

</llo_original>
